<compile_context>
chip_gen: v7x
topology: tpu7x:2x2x1
jax: 0.10.0
libtpu: 0.0.40
codegen_flags: <defaults>
</compile_context>

<pallas_src>
import functools

import jax
import jax.numpy as jnp
from jax.experimental import pallas as pl
from jax.experimental.pallas import tpu as pltpu


# --------------------------------------------------------------------------- #
# Kernel
# --------------------------------------------------------------------------- #
def _linear_kernel(x_ref, w_ref, o_ref):
    # x_ref : (tm, tk) bf16 activation tile
    # w_ref : (tk, tn) bf16 weight tile (already in (in, out) layout)
    # o_ref : (tm, tn) f32 output tile, resident across the K grid axis
    @pl.when(pl.program_id(2) == 0)
    def _():
        o_ref[...] = jnp.zeros_like(o_ref)

    o_ref[...] += jnp.dot(
        x_ref[...], w_ref[...], preferred_element_type=jnp.float32
    )


# --------------------------------------------------------------------------- #
# Tile selection (largest candidate that evenly divides the dim, else the
# full-array escape hatch -> single block along that axis).
# --------------------------------------------------------------------------- #
def _pick_tile(dim, candidates):
    for c in candidates:
        if c <= dim and dim % c == 0:
            return c
    return dim


# --------------------------------------------------------------------------- #
# Forward
# --------------------------------------------------------------------------- #
def prepare_weight(weight):
    """One-time relayout of the PyTorch (out, in) weight to (in, out) bf16.

    Do this OUTSIDE the per-call forward so the transpose/cast is not a
    repeated full HBM pass over the weight.
    """
    w = jnp.asarray(weight)
    return jnp.transpose(w, (1, 0)).astype(jnp.bfloat16)


@functools.partial(jax.jit, static_argnames=("tm", "tn", "tk"))
def _linear_forward_impl(x, w_t, *, tm, tn, tk):
    M, K = x.shape
    Kw, N = w_t.shape
    assert K == Kw, (K, Kw)
    assert M % tm == 0 and N % tn == 0 and K % tk == 0, (M, N, K, tm, tn, tk)

    # bf16 MXU feed; accumulation stays f32 inside the kernel.
    x_bf = x.astype(jnp.bfloat16)

    grid = (M // tm, N // tn, K // tk)

    # Double-buffered bf16 inputs + double-buffered f32 output block.
    vmem_needed = 2 * (tm * tk * 2 + tk * tn * 2) + 2 * tm * tn * 4
    vmem_limit = int(min(48 << 20, max(32 << 20, 2 * vmem_needed)))

    cost = pl.CostEstimate(
        flops=2 * M * N * K,
        bytes_accessed=M * K * 2 + K * N * 2 + M * N * 4,
        transcendentals=0,
    )

    return pl.pallas_call(
        _linear_kernel,
        out_shape=jax.ShapeDtypeStruct((M, N), jnp.float32),
        grid_spec=pltpu.PrefetchScalarGridSpec(
            num_scalar_prefetch=0,
            grid=grid,
            in_specs=[
                pl.BlockSpec((tm, tk), lambda i, j, k: (i, k)),
                pl.BlockSpec((tk, tn), lambda i, j, k: (k, j)),
            ],
            out_specs=pl.BlockSpec((tm, tn), lambda i, j, k: (i, j)),
        ),
        compiler_params=pltpu.CompilerParams(
            dimension_semantics=("parallel", "parallel", "arbitrary"),
            vmem_limit_bytes=vmem_limit,
        ),
        cost_estimate=cost,
    )(x_bf, w_t)


def linear_forward(x, w_t):
    """y = x @ W.T where w_t = prepare_weight(W) is (in_features, out_features) bf16."""
    M, K = x.shape
    _, N = w_t.shape
    tm = _pick_tile(M, (512, 256, 128, 64, 32, 16))
    tn = _pick_tile(N, (512, 256, 128))
    tk = _pick_tile(K, (1024, 512, 256, 128))
    return _linear_forward_impl(x, w_t, tm=tm, tn=tn, tk=tk)


def linear_model_forward(x, weight):
    """Convenience wrapper matching LinearModel.forward (weight in (out, in))."""
    return linear_forward(x, prepare_weight(weight))


def _reference_forward(x, weight):
    """Pure-JAX reference of the PyTorch forward: x @ weight.T (f32)."""
    return jnp.dot(x, weight.T)


# --------------------------------------------------------------------------- #
# Demo / self-check
# --------------------------------------------------------------------------- #
if __name__ == "__main__":
    key = jax.random.PRNGKey(0)
    kx, kw = jax.random.split(key)

    in_features = 256
    out_features = 256
    batch = 16

    # Input consistent with nn.Linear(256, 256, bias=False): (batch, in).
    x = jax.random.normal(kx, (batch, in_features), dtype=jnp.float32)
    # Module default weight is ones((256, 256)); use a small random weight so
    # the correctness check exercises every tile.
    weight = 0.05 * jax.random.normal(
        kw, (out_features, in_features), dtype=jnp.float32
    )

    # One-time weight relayout (outside the jitted per-call forward).
    w_t = prepare_weight(weight)

    y = linear_forward(x, w_t)
    y = jax.block_until_ready(y)

    y_ref = _reference_forward(x, weight)
    assert y.shape == (batch, out_features), y.shape
    # bf16 operand feed -> loosened tolerance vs the f32 reference.
    assert jnp.allclose(y, y_ref, atol=2e-2, rtol=2e-2), (
        float(jnp.max(jnp.abs(y - y_ref)))
    )

    print("KERNEL_OK")
</pallas_src>

<mosaic_0001>
module attributes {stable_mosaic.version = 11 : i64} {
  func.func @_linear_kernel(%arg0: i32, %arg1: i32, %arg2: i32, %arg3: memref<16x256xbf16, #tpu.memory_space<vmem>>, %arg4: memref<256x256xbf16, #tpu.memory_space<vmem>>, %arg5: memref<16x256xf32, #tpu.memory_space<vmem>>) attributes {dimension_semantics = [#tpu.dimension_semantics<parallel>, #tpu.dimension_semantics<parallel>, #tpu.dimension_semantics<arbitrary>], iteration_bounds = array<i64: 1, 1, 1>, scalar_prefetch = 0 : i64, scratch_operands = 0 : i64, tpu.core_type = #tpu.core_type<tc>, window_params = [{transform_indices = @transform_0, window_bounds = array<i64: 16, 256>}, {transform_indices = @transform_1, window_bounds = array<i64: 256, 256>}, {transform_indices = @transform_2, window_bounds = array<i64: 16, 256>}]} {
    %c0_i32 = arith.constant 0 : i32
    %0 = arith.cmpi eq, %arg2, %c0_i32 : i32
    %1 = arith.extui %0 : i1 to i32
    %c0_i32_0 = arith.constant 0 : i32
    %2 = arith.cmpi ne, %1, %c0_i32_0 : i32
    scf.if %2 {
      %cst_8 = arith.constant 0.000000e+00 : f32
      %9 = vector.broadcast %cst_8 : f32 to vector<16x256xf32>
      %c0_9 = arith.constant 0 : index
      %c0_10 = arith.constant 0 : index
      %10 = vector.load %arg5[%c0_9, %c0_10] : memref<16x256xf32, #tpu.memory_space<vmem>>, vector<16x256xf32>
      tpu.vector_store %arg5[%c0_9, %c0_10], %9 {strides = array<i32>} : memref<16x256xf32, #tpu.memory_space<vmem>>, vector<16x256xf32>,
    } else {
    }
    %c0 = arith.constant 0 : index
    %c0_1 = arith.constant 0 : index
    %3 = vector.load %arg5[%c0, %c0_1] : memref<16x256xf32, #tpu.memory_space<vmem>>, vector<16x256xf32>
    %c0_2 = arith.constant 0 : index
    %c0_3 = arith.constant 0 : index
    %4 = vector.load %arg3[%c0_2, %c0_3] : memref<16x256xbf16, #tpu.memory_space<vmem>>, vector<16x256xbf16>
    %c0_4 = arith.constant 0 : index
    %c0_5 = arith.constant 0 : index
    %5 = vector.load %arg4[%c0_4, %c0_5] : memref<256x256xbf16, #tpu.memory_space<vmem>>, vector<256x256xbf16>
    %cst = arith.constant dense<0.000000e+00> : vector<16x256xf32>
    %6 = tpu.matmul %4, %5, %cst {dimension_numbers = #tpu.dot_dimension_numbers<[1], [0], [0], [1], [0, 0, 1, 1], [], []>} : vector<16x256xbf16>, vector<256x256xbf16>, vector<16x256xf32> -> vector<16x256xf32>
    %7 = arith.addf %3, %6 : vector<16x256xf32>
    %c0_6 = arith.constant 0 : index
    %c0_7 = arith.constant 0 : index
    %8 = vector.load %arg5[%c0_6, %c0_7] : memref<16x256xf32, #tpu.memory_space<vmem>>, vector<16x256xf32>
    tpu.vector_store %arg5[%c0_6, %c0_7], %7 {strides = array<i32>} : memref<16x256xf32, #tpu.memory_space<vmem>>, vector<16x256xf32>,
    return
  }
  func.func @transform_0(%arg0: i32, %arg1: i32, %arg2: i32) -> (i32, i32) {
    %c0_i32 = arith.constant 0 : i32
    return %arg0, %arg2 : i32, i32
  }
  func.func @transform_1(%arg0: i32, %arg1: i32, %arg2: i32) -> (i32, i32) {
    %c0_i32 = arith.constant 0 : i32
    return %arg2, %arg1 : i32, i32
  }
  func.func @transform_2(%arg0: i32, %arg1: i32, %arg2: i32) -> (i32, i32) {
    %c0_i32 = arith.constant 0 : i32
    return %arg0, %arg1 : i32, i32
  }
}

</mosaic_0001>

<llo_original>
// kernel: _linear_forward_impl.1
$region0: #{_linear_forward_impl.1}
  #allocation0 [shape = 'u32[]', space=smem, size = 0x4, offset = 0x4, fixed_abs, tag = 'smem constant byte address 0x4 - core index']
  #allocation1 [shape = 'u32[144,128]{1,0:T(1,128)}', space=vmem, size = 0x12000, scoped, tag = 'internal scratch']
  %s0 = inlined_call_operand.vmem [shape: bf16[16,256], index: 0, kind: input, shape index: {}]
  %s1 = inlined_call_operand.hbm [shape: bf16[256,256], index: 1, kind: input, shape index: {}]
  %s2 = inlined_call_operand.hbm [shape: f32[16,256], index: 2, kind: output, shape index: {}]
  %s3 = sld [smem:[#allocation0]]
  $region26: #{_linear_forward_impl.1} parent=0
    _
  %s5 = ssub.s32 1, %s3
  %s6 = scalar_select 0, %s5, %s3
  $region1: #{_linear_forward_impl.1} parent=0
    #allocation2 [shape = 'u8[131072]{0}', space=vmem, size = 0x20000, scoped, tag = 'input window, operand 1, single buffered']
    #allocation3 [shape = 's32[1]{0}', space=sflag, size = 0x4, scoped, tag = 'scoped memory for _linear_forward_impl.1']
    #allocation4 [shape = 's32[1]{0}', space=sflag, size = 0x4, scoped, tag = 'scoped memory for _linear_forward_impl.1']
    #allocation5 [shape = 'u8[16384]{0}', space=vmem, size = 0x4000, scoped, tag = 'output window, operand 0, single buffered']
    %7 = vsyncpa [#allocation3], 0
    %8 = vsyncpa [#allocation4], 0
    // Predicated region
    $region2: #{_linear_forward_impl.1} parent=1 // pred_check
      _
    $region3: #{_linear_forward_impl.1} parent=1 // pred_check_branch
      %10 = sbr.rel (0) target = $region5
    $region4: #{_linear_forward_impl.1} parent=1 // pred_region
      _
    $region5: #{_linear_forward_impl.1} parent=1 // pred_fallthru
      _
    // Predicated region
    $region6: #{_linear_forward_impl.1} parent=1 // pred_check
      _
    $region7: #{_linear_forward_impl.1} parent=1 // pred_check_branch
      %12 = sbr.rel (0) target = $region9
    $region8: #{_linear_forward_impl.1} parent=1 // pred_region
      %s14 = ssub.s32 4096, 4096
      %15 = vsyncadd [#allocation3], %s14
      %s16 = sshll.u32 [#allocation2], 4
      %s17 = int_to_ptr.vmem [resolvable:$true] %s16
      %22 = dma.hbm_to_vmem [thread:$0]  %s1, 4096, %s17, [#allocation3], 128, 128, 8
    $region9: #{_linear_forward_impl.1} parent=1 // pred_fallthru
      _
    // Predicated region
    $region10: #{_linear_forward_impl.1} parent=1 // pred_check
      _
    $region11: #{_linear_forward_impl.1} parent=1 // pred_check_branch
      %24 = sbr.rel (0) target = $region13
    $region12: #{_linear_forward_impl.1} parent=1 // pred_region
      %25 = dma.done [#allocation3], 4096
    $region13: #{_linear_forward_impl.1} parent=1 // pred_fallthru
      _
    %p26 = scmp.eq.s32.totalorder 0, 0
    // Predicated region
    $region14: #{_linear_forward_impl.1} parent=1 // pred_check
      %p27 = pneg %p26
    $region15: #{_linear_forward_impl.1} parent=1 // pred_check_branch
      %29 = sbr.rel (%p27) target = $region17
    $region16: #{_linear_forward_impl.1} parent=1 // pred_region
      %30 = vst [vmem:[#allocation5] sm:$0xff] 0.0
      %31 = vst [vmem:[#allocation5 + $0x8] sm:$0xff] 0.0
      %32 = vst [vmem:[#allocation5 + $0x10] sm:$0xff] 0.0
      %33 = vst [vmem:[#allocation5 + $0x18] sm:$0xff] 0.0
    $region17: #{_linear_forward_impl.1} parent=1 // pred_fallthru
      _
    %v34 = vld [vmem:[#allocation5] sm:$0xff]
    %v35 = vld [vmem:[#allocation5 + $0x8] sm:$0xff]
    %v36 = vld [vmem:[#allocation5 + $0x10] sm:$0xff]
    %v37 = vld [vmem:[#allocation5 + $0x18] sm:$0xff]
    %v38 = vld [vmem:[%s0] sm:$0xff]
    %v39 = vld [vmem:[%s0 + $0x8] sm:$0xff]
    %v40 = vld [vmem:[#allocation2] sm:$0xff]
    %v41 = vld [vmem:[#allocation2 + $0x8] sm:$0xff]
    %v42 = vld [vmem:[#allocation2 + $0x10] sm:$0xff]
    %v43 = vld [vmem:[#allocation2 + $0x18] sm:$0xff]
    %v44 = vld [vmem:[#allocation2 + $0x20] sm:$0xff]
    %v45 = vld [vmem:[#allocation2 + $0x28] sm:$0xff]
    %v46 = vld [vmem:[#allocation2 + $0x30] sm:$0xff]
    %v47 = vld [vmem:[#allocation2 + $0x38] sm:$0xff]
    %v48 = vld [vmem:[#allocation2 + $0x40] sm:$0xff]
    %v49 = vld [vmem:[#allocation2 + $0x48] sm:$0xff]
    %v50 = vld [vmem:[#allocation2 + $0x50] sm:$0xff]
    %v51 = vld [vmem:[#allocation2 + $0x58] sm:$0xff]
    %v52 = vld [vmem:[#allocation2 + $0x60] sm:$0xff]
    %v53 = vld [vmem:[#allocation2 + $0x68] sm:$0xff]
    %v54 = vld [vmem:[#allocation2 + $0x70] sm:$0xff]
    %v55 = vld [vmem:[#allocation2 + $0x78] sm:$0xff]
    %v56 = vld [vmem:[#allocation2 + $0x80] sm:$0xff]
    %v57 = vld [vmem:[#allocation2 + $0x88] sm:$0xff]
    %v58 = vld [vmem:[#allocation2 + $0x90] sm:$0xff]
    %v59 = vld [vmem:[#allocation2 + $0x98] sm:$0xff]
    %v60 = vld [vmem:[#allocation2 + $0xa0] sm:$0xff]
    %v61 = vld [vmem:[#allocation2 + $0xa8] sm:$0xff]
    %v62 = vld [vmem:[#allocation2 + $0xb0] sm:$0xff]
    %v63 = vld [vmem:[#allocation2 + $0xb8] sm:$0xff]
    %v64 = vld [vmem:[#allocation2 + $0xc0] sm:$0xff]
    %v65 = vld [vmem:[#allocation2 + $0xc8] sm:$0xff]
    %v66 = vld [vmem:[#allocation2 + $0xd0] sm:$0xff]
    %v67 = vld [vmem:[#allocation2 + $0xd8] sm:$0xff]
    %v68 = vld [vmem:[#allocation2 + $0xe0] sm:$0xff]
    %v69 = vld [vmem:[#allocation2 + $0xe8] sm:$0xff]
    %v70 = vld [vmem:[#allocation2 + $0xf0] sm:$0xff]
    %v71 = vld [vmem:[#allocation2 + $0xf8] sm:$0xff]
    %v74 = vunpack.c.l.b16 %v38
    %v75 = vunpack.c.h.b16 %v38
    %v76 = vunpack.c.l.b16 %v39
    %v77 = vunpack.c.h.b16 %v39
    %v78 = vpack.c.b16 %v76, %v74
    %v79 = vpack.c.b16 %v77, %v75
    %v114 = vunpack.c.l.b16 %v40
    %v115 = vunpack.c.h.b16 %v40
    %v116 = vunpack.c.l.b16 %v41
    %v117 = vunpack.c.h.b16 %v41
    %v118 = vunpack.c.l.b16 %v42
    %v119 = vunpack.c.h.b16 %v42
    %v120 = vunpack.c.l.b16 %v43
    %v121 = vunpack.c.h.b16 %v43
    %v122 = vunpack.c.l.b16 %v44
    %v123 = vunpack.c.h.b16 %v44
    %v124 = vunpack.c.l.b16 %v45
    %v125 = vunpack.c.h.b16 %v45
    %v126 = vunpack.c.l.b16 %v46
    %v127 = vunpack.c.h.b16 %v46
    %v128 = vunpack.c.l.b16 %v47
    %v129 = vunpack.c.h.b16 %v47
    %v130 = vunpack.c.l.b16 %v48
    %v131 = vunpack.c.h.b16 %v48
    %v132 = vunpack.c.l.b16 %v49
    %v133 = vunpack.c.h.b16 %v49
    %v134 = vunpack.c.l.b16 %v50
    %v135 = vunpack.c.h.b16 %v50
    %v136 = vunpack.c.l.b16 %v51
    %v137 = vunpack.c.h.b16 %v51
    %v138 = vunpack.c.l.b16 %v52
    %v139 = vunpack.c.h.b16 %v52
    %v140 = vunpack.c.l.b16 %v53
    %v141 = vunpack.c.h.b16 %v53
    %v142 = vunpack.c.l.b16 %v54
    %v143 = vunpack.c.h.b16 %v54
    %v144 = vunpack.c.l.b16 %v55
    %v145 = vunpack.c.h.b16 %v55
    %v146 = vunpack.c.l.b16 %v56
    %v147 = vunpack.c.h.b16 %v56
    %v148 = vunpack.c.l.b16 %v57
    %v149 = vunpack.c.h.b16 %v57
    %v150 = vunpack.c.l.b16 %v58
    %v151 = vunpack.c.h.b16 %v58
    %v152 = vunpack.c.l.b16 %v59
    %v153 = vunpack.c.h.b16 %v59
    %v154 = vunpack.c.l.b16 %v60
    %v155 = vunpack.c.h.b16 %v60
    %v156 = vunpack.c.l.b16 %v61
    %v157 = vunpack.c.h.b16 %v61
    %v158 = vunpack.c.l.b16 %v62
    %v159 = vunpack.c.h.b16 %v62
    %v160 = vunpack.c.l.b16 %v63
    %v161 = vunpack.c.h.b16 %v63
    %v162 = vunpack.c.l.b16 %v64
    %v163 = vunpack.c.h.b16 %v64
    %v164 = vunpack.c.l.b16 %v65
    %v165 = vunpack.c.h.b16 %v65
    %v166 = vunpack.c.l.b16 %v66
    %v167 = vunpack.c.h.b16 %v66
    %v168 = vunpack.c.l.b16 %v67
    %v169 = vunpack.c.h.b16 %v67
    %v170 = vunpack.c.l.b16 %v68
    %v171 = vunpack.c.h.b16 %v68
    %v172 = vunpack.c.l.b16 %v69
    %v173 = vunpack.c.h.b16 %v69
    %v174 = vunpack.c.l.b16 %v70
    %v175 = vunpack.c.h.b16 %v70
    %v176 = vunpack.c.l.b16 %v71
    %v177 = vunpack.c.h.b16 %v71
    %v178 = vpack.c.b16 %v116, %v114
    %v179 = vpack.c.b16 %v117, %v115
    %v180 = vpack.c.b16 %v120, %v118
    %v181 = vpack.c.b16 %v121, %v119
    %v182 = vpack.c.b16 %v124, %v122
    %v183 = vpack.c.b16 %v125, %v123
    %v184 = vpack.c.b16 %v128, %v126
    %v185 = vpack.c.b16 %v129, %v127
    %v186 = vpack.c.b16 %v132, %v130
    %v187 = vpack.c.b16 %v133, %v131
    %v188 = vpack.c.b16 %v136, %v134
    %v189 = vpack.c.b16 %v137, %v135
    %v190 = vpack.c.b16 %v140, %v138
    %v191 = vpack.c.b16 %v141, %v139
    %v192 = vpack.c.b16 %v144, %v142
    %v193 = vpack.c.b16 %v145, %v143
    %v194 = vpack.c.b16 %v148, %v146
    %v195 = vpack.c.b16 %v149, %v147
    %v196 = vpack.c.b16 %v152, %v150
    %v197 = vpack.c.b16 %v153, %v151
    %v198 = vpack.c.b16 %v156, %v154
    %v199 = vpack.c.b16 %v157, %v155
    %v200 = vpack.c.b16 %v160, %v158
    %v201 = vpack.c.b16 %v161, %v159
    %v202 = vpack.c.b16 %v164, %v162
    %v203 = vpack.c.b16 %v165, %v163
    %v204 = vpack.c.b16 %v168, %v166
    %v205 = vpack.c.b16 %v169, %v167
    %v206 = vpack.c.b16 %v172, %v170
    %v207 = vpack.c.b16 %v173, %v171
    %v208 = vpack.c.b16 %v176, %v174
    %v209 = vpack.c.b16 %v177, %v175
    %242 = vmatprep.subr.bf16.mxu0 %v179
    %243 = vmatpush1.bf16.msra.mxu0 %v178
    %244 = vmatprep.subr.bf16.mxu0 %v181
    %245 = vmatpush1.bf16.msra.mxu0 %v180
    %246 = vmatprep.subr.bf16.mxu0 %v183
    %247 = vmatpush1.bf16.msra.mxu0 %v182
    %248 = vmatprep.subr.bf16.mxu0 %v185
    %249 = vmatpush1.bf16.msra.mxu0 %v184
    %250 = vmatprep.subr.bf16.mxu0 %v187
    %251 = vmatpush1.bf16.msra.mxu0 %v186
    %252 = vmatprep.subr.bf16.mxu0 %v189
    %253 = vmatpush1.bf16.msra.mxu0 %v188
    %254 = vmatprep.subr.bf16.mxu0 %v191
    %255 = vmatpush1.bf16.msra.mxu0 %v190
    %256 = vmatprep.subr.bf16.mxu0 %v193
    %257 = vmatpush1.bf16.msra.mxu0 %v192
    %258 = vmatprep.subr.bf16.mxu0 %v195
    %259 = vmatpush1.bf16.msra.mxu0 %v194
    %260 = vmatprep.subr.bf16.mxu0 %v197
    %261 = vmatpush1.bf16.msra.mxu0 %v196
    %262 = vmatprep.subr.bf16.mxu0 %v199
    %263 = vmatpush1.bf16.msra.mxu0 %v198
    %264 = vmatprep.subr.bf16.mxu0 %v201
    %265 = vmatpush1.bf16.msra.mxu0 %v200
    %266 = vmatprep.subr.bf16.mxu0 %v203
    %267 = vmatpush1.bf16.msra.mxu0 %v202
    %268 = vmatprep.subr.bf16.mxu0 %v205
    %269 = vmatpush1.bf16.msra.mxu0 %v204
    %270 = vmatprep.subr.bf16.mxu0 %v207
    %271 = vmatpush1.bf16.msra.mxu0 %v206
    %272 = vmatprep.subr.bf16.mxu0 %v209
    %273 = vmatpush1.bf16.msra.mxu0 %v208
    %274 = vmatprep.mubr.bf16.mxu0 %v79
    %275 = vmatmul.mubr.bf16.gmra.mrb[0].mxu0 %v78
    %v276 = vpop.f32.mrb[0].mxu0
    %v277 = vadd.f32 0.0, %v276
    %v278 = vpop.f32.mrb[0].mxu0
    %v279 = vadd.f32 0.0, %v278
    %v280 = vpop.f32.mrb[0].mxu0
    %v281 = vadd.f32 0.0, %v280
    %v282 = vpop.f32.mrb[0].mxu0
    %v283 = vadd.f32 0.0, %v282
    %284 = vdwg.mxu0
    %v285 = vadd.f32 %v34, %v277
    %v286 = vadd.f32 %v35, %v279
    %v287 = vadd.f32 %v36, %v281
    %v288 = vadd.f32 %v37, %v283
    %289 = vst [vmem:[#allocation5] sm:$0xff] %v285
    %290 = vst [vmem:[#allocation5 + $0x8] sm:$0xff] %v286
    %291 = vst [vmem:[#allocation5 + $0x10] sm:$0xff] %v287
    %292 = vst [vmem:[#allocation5 + $0x18] sm:$0xff] %v288
    // Predicated region
    $region18: #{_linear_forward_impl.1} parent=1 // pred_check
      _
    $region19: #{_linear_forward_impl.1} parent=1 // pred_check_branch
      %294 = sbr.rel (0) target = $region21
    $region20: #{_linear_forward_impl.1} parent=1 // pred_region
      %s296 = ssub.s32 512, 512
      %297 = vsyncadd [#allocation4], %s296
      %s298 = sshll.u32 [#allocation5], 4
      %s299 = int_to_ptr.vmem [resolvable:$true] %s298
      %304 = dma.vmem_to_hbm [thread:$0]  %s299, 512, %s2, [#allocation4], 256, 256, 16
    $region21: #{_linear_forward_impl.1} parent=1 // pred_fallthru
      _
    // Predicated region
    $region22: #{_linear_forward_impl.1} parent=1 // pred_check
      _
    $region23: #{_linear_forward_impl.1} parent=1 // pred_check_branch
      %306 = sbr.rel (0) target = $region25
    $region24: #{_linear_forward_impl.1} parent=1 // pred_region
      %307 = dma.done [#allocation4], 512
    $region25: #{_linear_forward_impl.1} parent=1 // pred_fallthru
      _
    %308 = vsyncpa [#allocation3], 1
    %309 = vsyncpa [#allocation4], 1

</llo_original>
